<compile_context>
chip_gen: v5e
topology: v5e:2x2
jax: 0.10.0
libtpu: 0.0.40
codegen_flags: <defaults>
</compile_context>

<pallas_src>
import functools

import jax
import jax.numpy as jnp
from jax import lax
from jax.experimental import pallas as pl
from jax.experimental.pallas import tpu as pltpu


# ----------------------------------------------------------------------------
# Kernels
# ----------------------------------------------------------------------------
def _ray_affine_kernel(params_ref, out_ref):
    """params_ref (SMEM, f32[4]) = [x_scale, y_scale, x_offset, y_offset].

    out_ref: (H, 2*W) interleaved layout:
        out[i, 2*j    ] = j * x_scale + x_offset
        out[i, 2*j + 1] = i * y_scale + y_offset
    """
    H, W2 = out_ref.shape
    lane = lax.broadcasted_iota(jnp.int32, (H, W2), 1)
    is_x = (lane & 1) == 0
    col = (lane >> 1).astype(jnp.float32)                              # j per lane pair
    row = lax.broadcasted_iota(jnp.int32, (H, 1), 0).astype(jnp.float32)  # i, (H, 1)

    x_val = col * params_ref[0] + params_ref[2]   # (H, 2W)
    y_val = row * params_ref[1] + params_ref[3]   # (H, 1) -> broadcast in select
    out_ref[...] = jnp.where(is_x, x_val, y_val)


def _ray_random_kernel(scales_ref, u_ref, out_ref):
    """scales_ref (SMEM, f32[2]) = [img_w, img_h]; u_ref: uniform [0,1), (H, 2*W).

    Even lanes (x) scaled by img_w, odd lanes (y) scaled by img_h — matches
    torch.rand(N, 2) * [img_w, img_h] after the free reshape to (H*W, 2).
    """
    H, W2 = out_ref.shape
    lane = lax.broadcasted_iota(jnp.int32, (H, W2), 1)
    is_x = (lane & 1) == 0
    scale = jnp.where(is_x, scales_ref[0], scales_ref[1])
    out_ref[...] = u_ref[...] * scale


# ----------------------------------------------------------------------------
# pallas_call wrappers (no grid: single whole-array block)
# ----------------------------------------------------------------------------
@functools.partial(jax.jit, static_argnames=("H", "W"))
def _affine_rays(params, *, H, W):
    planes = pl.pallas_call(
        _ray_affine_kernel,
        out_shape=jax.ShapeDtypeStruct((H, 2 * W), jnp.float32),
        in_specs=[pl.BlockSpec(memory_space=pltpu.MemorySpace.SMEM)],
        out_specs=pl.BlockSpec(memory_space=pltpu.MemorySpace.VMEM),
    )(params)
    return planes.reshape(H * W, 2)   # free row-major reshape


@functools.partial(jax.jit, static_argnames=("H", "W"))
def _random_rays(scales, u, *, H, W):
    planes = pl.pallas_call(
        _ray_random_kernel,
        out_shape=jax.ShapeDtypeStruct((H, 2 * W), jnp.float32),
        in_specs=[
            pl.BlockSpec(memory_space=pltpu.MemorySpace.SMEM),
            pl.BlockSpec(memory_space=pltpu.MemorySpace.VMEM),
        ],
        out_specs=pl.BlockSpec(memory_space=pltpu.MemorySpace.VMEM),
    )(scales, u)
    return planes.reshape(H * W, 2)


# ----------------------------------------------------------------------------
# Module
# ----------------------------------------------------------------------------
class RaySampler:
    """JAX/Pallas port of the PyTorch RaySampler."""

    def __init__(self, ray_sample_mode="fixed", ray_number=(16, 128),
                 ray_img_size=(64, 256), ray_upper_crop=0,
                 ray_x_dsr_max=None, ray_y_dsr_max=None):
        assert ray_sample_mode in ("fixed", "cellular", "random")
        self.ray_sample_mode = ray_sample_mode
        self.ray_resize = list(ray_number)
        self.ray_number = ray_number[0] * ray_number[1]
        self.ray_img_size = list(ray_img_size)
        self.ray_upper_crop = ray_upper_crop

        H, W = ray_number
        if ray_sample_mode == "fixed":
            # Pure constant of (H, W, img_size): compute once and cache.
            x_dsr = 1.0 * ray_img_size[1] / W
            y_dsr = 1.0 * ray_img_size[0] / H
            params = jnp.array([x_dsr, y_dsr, 0.0, 0.0], jnp.float32)
            self.rays = jax.block_until_ready(_affine_rays(params, H=H, W=W))
        elif ray_sample_mode == "cellular":
            self.ray_x_dsr_max = 1.0 * ray_img_size[1] / W
            self.ray_y_dsr_max = 1.0 * (ray_img_size[0] - ray_upper_crop) / H
            if ray_x_dsr_max is not None:
                self.ray_x_dsr_max = ray_x_dsr_max
            if ray_y_dsr_max is not None:
                self.ray_y_dsr_max = ray_y_dsr_max
            assert self.ray_x_dsr_max > 1 and self.ray_y_dsr_max > 1

    def forward(self, key=None):
        H, W = self.ray_resize
        if self.ray_sample_mode == "fixed":
            return self.rays

        if self.ray_sample_mode == "random":
            assert key is not None
            u = jax.random.uniform(key, (H, 2 * W), dtype=jnp.float32)
            scales = jnp.array([self.ray_img_size[1], self.ray_img_size[0]],
                               jnp.float32)
            return _random_rays(scales, u, H=H, W=W)

        # cellular: random scalar scale/offset (np.random.uniform in torch),
        # drawn with jax.random here; affine applied in the Pallas kernel.
        assert key is not None
        k0, k1, k2, k3 = jax.random.split(key, 4)
        u = lambda k: jax.random.uniform(k, (), jnp.float32)
        ray_x_dsr = u(k0) * (self.ray_x_dsr_max - 1.0) + 1.0
        ray_y_dsr = u(k1) * (self.ray_y_dsr_max - 1.0) + 1.0
        ray_x_emp_max = self.ray_img_size[1] - W * ray_x_dsr
        ray_y_emp_max = self.ray_img_size[0] - self.ray_upper_crop - H * ray_y_dsr
        ray_x_emp = u(k2) * ray_x_emp_max
        ray_y_emp = u(k3) * ray_y_emp_max
        params = jnp.stack([
            ray_x_dsr,
            ray_y_dsr,
            ray_x_emp,
            ray_y_emp + jnp.float32(self.ray_upper_crop),
        ]).astype(jnp.float32)
        return _affine_rays(params, H=H, W=W)

    __call__ = forward


# ----------------------------------------------------------------------------
# Main
# ----------------------------------------------------------------------------
if __name__ == "__main__":
    key = jax.random.PRNGKey(0)

    # Small shapes consistent with the module: (rows, cols), (img_h, img_w).
    ray_number = (16, 128)
    ray_img_size = (64, 256)
    N = ray_number[0] * ray_number[1]

    # --- fixed mode (default path; cached constant) ---
    sampler = RaySampler("fixed", ray_number, ray_img_size)
    rays_fixed = jax.block_until_ready(sampler())
    assert rays_fixed.shape == (N, 2)

    # Pure-JAX reference check for the fixed path.
    x_dsr = ray_img_size[1] / ray_number[1]
    y_dsr = ray_img_size[0] / ray_number[0]
    ray_x = jnp.arange(ray_number[1], dtype=jnp.float32) * x_dsr
    ray_y = jnp.arange(ray_number[0], dtype=jnp.float32) * y_dsr
    ref = jnp.stack(
        [jnp.broadcast_to(ray_x[None, :], ray_number),
         jnp.broadcast_to(ray_y[:, None], ray_number)], axis=-1
    ).reshape(-1, 2)
    assert jnp.allclose(rays_fixed, ref), "fixed-mode mismatch vs reference"

    # --- cellular mode (same affine kernel, random scale/offset scalars) ---
    sampler_c = RaySampler("cellular", ray_number, ray_img_size, ray_upper_crop=4)
    rays_cell = jax.block_until_ready(sampler_c(key))
    assert rays_cell.shape == (N, 2)
    rc = rays_cell.reshape(ray_number[0], ray_number[1], 2)
    dx = rc[0, 1:, 0] - rc[0, :-1, 0]
    assert jnp.allclose(dx, dx[0], atol=1e-4), "cellular x spacing not affine"
    assert jnp.allclose(rc[3, :, 1], rc[3, 0, 1], atol=1e-5), "cellular y not row-constant"
    assert bool(jnp.all(rc[..., 0] >= 0) & jnp.all(rc[..., 0] <= ray_img_size[1]))
    assert bool(jnp.all(rc[..., 1] >= 0) & jnp.all(rc[..., 1] <= ray_img_size[0]))

    # --- random mode (uniform * image size, interleaved in-kernel) ---
    sampler_r = RaySampler("random", ray_number, ray_img_size)
    rays_rand = jax.block_until_ready(sampler_r(key))
    assert rays_rand.shape == (N, 2)
    assert bool(jnp.all(rays_rand[:, 0] >= 0) & jnp.all(rays_rand[:, 0] < ray_img_size[1]))
    assert bool(jnp.all(rays_rand[:, 1] >= 0) & jnp.all(rays_rand[:, 1] < ray_img_size[0]))

    print("KERNEL_OK")
</pallas_src>

<mosaic_0001>
module attributes {stable_mosaic.version = 11 : i64} {
  func.func @_ray_affine_kernel(%arg0: memref<4xf32, #tpu.memory_space<smem>>, %arg1: memref<16x256xf32, #tpu.memory_space<vmem>>) attributes {dimension_semantics = [], scalar_prefetch = 0 : i64, scratch_operands = 0 : i64, tpu.core_type = #tpu.core_type<tc>} {
    %0 = tpu.iota {dimensions = array<i32: 1>} : vector<16x256xi32>
    %c1_i32 = arith.constant 1 : i32
    %1 = vector.broadcast %c1_i32 : i32 to vector<16x256xi32>
    %2 = arith.andi %0, %1 : vector<16x256xi32>
    %c0_i32 = arith.constant 0 : i32
    %3 = vector.broadcast %c0_i32 : i32 to vector<16x256xi32>
    %4 = arith.cmpi eq, %2, %3 : vector<16x256xi32>
    %c1_i32_0 = arith.constant 1 : i32
    %5 = vector.broadcast %c1_i32_0 : i32 to vector<16x256xi32>
    %6 = arith.shrsi %0, %5 : vector<16x256xi32>
    %7 = arith.sitofp %6 : vector<16x256xi32> to vector<16x256xf32>
    %8 = tpu.iota {dimensions = array<i32: 0>} : vector<16x1xi32>
    %9 = arith.sitofp %8 : vector<16x1xi32> to vector<16x1xf32>
    %c0 = arith.constant 0 : index
    %10 = memref.load %arg0[%c0] : memref<4xf32, #tpu.memory_space<smem>>
    %11 = vector.broadcast %10 : f32 to vector<16x256xf32>
    %12 = arith.mulf %7, %11 : vector<16x256xf32>
    %c2 = arith.constant 2 : index
    %13 = memref.load %arg0[%c2] : memref<4xf32, #tpu.memory_space<smem>>
    %14 = vector.broadcast %13 : f32 to vector<16x256xf32>
    %15 = arith.addf %12, %14 : vector<16x256xf32>
    %c1 = arith.constant 1 : index
    %16 = memref.load %arg0[%c1] : memref<4xf32, #tpu.memory_space<smem>>
    %17 = vector.broadcast %16 : f32 to vector<16x1xf32>
    %18 = arith.mulf %9, %17 : vector<16x1xf32>
    %c3 = arith.constant 3 : index
    %19 = memref.load %arg0[%c3] : memref<4xf32, #tpu.memory_space<smem>>
    %20 = vector.broadcast %19 : f32 to vector<16x1xf32>
    %21 = arith.addf %18, %20 : vector<16x1xf32>
    %22 = vector.shape_cast %21 : vector<16x1xf32> to vector<16x1xf32>
    %23 = vector.broadcast %22 : vector<16x1xf32> to vector<16x256xf32>
    %24 = arith.select %4, %15, %23 : vector<16x256xi1>, vector<16x256xf32>
    %c0_1 = arith.constant 0 : index
    %c0_2 = arith.constant 0 : index
    %25 = vector.load %arg1[%c0_1, %c0_2] : memref<16x256xf32, #tpu.memory_space<vmem>>, vector<16x256xf32>
    tpu.vector_store %arg1[%c0_1, %c0_2], %24 {strides = array<i32>} : memref<16x256xf32, #tpu.memory_space<vmem>>, vector<16x256xf32>,
    return
  }
}

</mosaic_0001>

<llo_original>
// kernel: _affine_rays.1
$region0: #{_affine_rays.1}
  #allocation0 [shape = 'u32[]', space=smem, size = 0x4, offset = 0x4, fixed_abs, tag = 'smem constant byte address 0x4 - core index']
  #allocation1 [shape = 'u32[72,128]{1,0:T(1,128)}', space=vmem, size = 0x9000, scoped, tag = 'internal scratch']
  %s0 = inlined_call_operand.hbm [shape: f32[4], index: 0, kind: input, shape index: {}]
  %s1 = inlined_call_operand.vmem [shape: f32[16,256], index: 1, kind: output, shape index: {}]
  %s2 = sld [smem:[#allocation0]]
  $region18: #{_affine_rays.1} parent=0
    _
  %s4 = ssub.s32 1, %s2
  %s5 = scalar_select 0, %s4, %s2
  $region1: #{_affine_rays.1} parent=0
    #allocation2 [shape = 'u8[512]{0}', space=smem, size = 0x200, scoped, tag = 'input window, operand 0, single buffered']
    #allocation3 [shape = 's32[1]{0}', space=sflag, size = 0x4, scoped, tag = 'scoped memory for _affine_rays.1']
    %6 = vsyncpa [#allocation3], 0
    // Predicated region
    $region2: #{_affine_rays.1} parent=1 // pred_check
      _
    $region3: #{_affine_rays.1} parent=1 // pred_check_branch
      %8 = sbr.rel (0) target = $region5
    $region4: #{_affine_rays.1} parent=1 // pred_region
      %10 = vsyncadd [#allocation3], 0
      %s12 = sshll.u32 %s0, 4
      %s13 = int_to_ptr.hbm [resolvable:$true] %s12
      %15 = dma.hbm_to_smem %s13, 16, [#allocation2], [#allocation3]
    $region5: #{_affine_rays.1} parent=1 // pred_fallthru
      _
    // Predicated region
    $region6: #{_affine_rays.1} parent=1 // pred_check
      _
    $region7: #{_affine_rays.1} parent=1 // pred_check_branch
      %17 = sbr.rel (0) target = $region9
    $region8: #{_affine_rays.1} parent=1 // pred_region
      %19 = dma.done [#allocation3], 16
    $region9: #{_affine_rays.1} parent=1 // pred_fallthru
      _
    %20 = sfence
    %v21 = vlaneseq
    %v22 = vand.u32 %v21, 127
    %v23 = vadd.s32 %v22, 128
    %v24 = vand.u32 %v22, 1
    %v25 = vand.u32 %v23, 1
    %vm26 = vcmp.eq.s32.totalorder %v24, 0
    %vm27 = vcmp.eq.s32.totalorder %v25, 0
    %v28 = vshra.s32 %v22, 1
    %v29 = vshra.s32 %v23, 1
    %v30 = vcvt.s32.f32 %v28
    %v31 = vcvt.s32.f32 %v29
    %v32 = vlaneseq
    %v33 = vshrl.u32 %v32, 7
    %v34 = vadd.s32 %v33, 8
    %v35 = vcvt.s32.f32 %v33
    %v36 = vcvt.s32.f32 %v34
    %s37 = sld [smem:[#allocation2]]
    %v38 = vstv %s37
    %v39 = vmul.f32 %v30, %v38
    %v40 = vmul.f32 %v31, %v38
    %s41 = sld [smem:[#allocation2 + $0x2]]
    %v42 = vstv %s41
    %v43 = vadd.f32 %v39, %v42
    %v44 = vadd.f32 %v40, %v42
    %s45 = sld [smem:[#allocation2 + $0x1]]
    %v46 = vstv %s45
    %v47 = vmul.f32 %v35, %v46
    %v48 = vmul.f32 %v36, %v46
    %s49 = sld [smem:[#allocation2 + $0x3]]
    %v50 = vstv %s49
    %v51 = vadd.f32 %v47, %v50
    %v52 = vadd.f32 %v48, %v50
    %v53 = vsel %vm26, %v43, %v51
    %v54 = vsel %vm27, %v44, %v51
    %v55 = vsel %vm26, %v43, %v52
    %v56 = vsel %vm27, %v44, %v52
    %57 = vst [vmem:[%s1] sm:$0xff] %v53
    %58 = vst [vmem:[%s1 + $0x8] sm:$0xff] %v54
    %59 = vst [vmem:[%s1 + $0x10] sm:$0xff] %v55
    %60 = vst [vmem:[%s1 + $0x18] sm:$0xff] %v56
    // Predicated region
    $region10: #{_affine_rays.1} parent=1 // pred_check
      _
    $region11: #{_affine_rays.1} parent=1 // pred_check_branch
      %62 = sbr.rel (0) target = $region13
    $region12: #{_affine_rays.1} parent=1 // pred_region
      _
    $region13: #{_affine_rays.1} parent=1 // pred_fallthru
      _
    // Predicated region
    $region14: #{_affine_rays.1} parent=1 // pred_check
      _
    $region15: #{_affine_rays.1} parent=1 // pred_check_branch
      %64 = sbr.rel (0) target = $region17
    $region16: #{_affine_rays.1} parent=1 // pred_region
      _
    $region17: #{_affine_rays.1} parent=1 // pred_fallthru
      _
    %65 = vsyncpa [#allocation3], 1

</llo_original>
